<compile_context>
chip_gen: v7x
topology: tpu7x:2x2x1
jax: 0.10.0
libtpu: 0.0.40
codegen_flags: <defaults>
</compile_context>

<pallas_src>
import jax
import jax.numpy as jnp
from jax import lax
from jax.experimental import pallas as pl
from jax.experimental.pallas import tpu as pltpu


def _ffn_kernel(x_ref, w1_ref, b1_ref, w2_ref, b2_ref, o_ref, acc_ref):
    # x_ref:  (tm, dim)      current row tile
    # w1_ref: (th, dim)      fc1 weight slice (torch layout: (out, in))
    # b1_ref: (1, th)        fc1 bias slice
    # w2_ref: (dim, th)      fc2 weight slice (torch layout: (out, in))
    # b2_ref: (1, dim)       fc2 bias
    # acc_ref:(tm, dim) f32  fc2 accumulator (resident across hidden axis)
    h_idx = pl.program_id(1)
    nh = pl.num_programs(1)

    @pl.when(h_idx == 0)
    def _():
        acc_ref[...] = jnp.zeros_like(acc_ref)

    # fc1 slice: (tm, dim) x (th, dim) contracted on dim -> (tm, th), f32 acc.
    h = lax.dot_general(
        x_ref[...], w1_ref[...],
        dimension_numbers=(((1,), (1,)), ((), ())),
        preferred_element_type=jnp.float32,
    )
    h = h + b1_ref[...].astype(jnp.float32)

    # Exact (erf-based) GELU, matching torch nn.GELU() default.
    h = 0.5 * h * (1.0 + lax.erf(h * 0.7071067811865476))

    # fc2 partial: (tm, th) x (dim, th) contracted on th -> (tm, dim).
    y = lax.dot_general(
        h.astype(w2_ref.dtype), w2_ref[...],
        dimension_numbers=(((1,), (1,)), ((), ())),
        preferred_element_type=jnp.float32,
    )
    acc_ref[...] += y

    @pl.when(h_idx == nh - 1)
    def _():
        o_ref[...] = (acc_ref[...] + b2_ref[...].astype(jnp.float32)).astype(
            o_ref.dtype)


def _pick_hidden_tile(hidden, requested):
    """Largest multiple of 128 that divides `hidden` and is <= requested,
    else the full hidden dim (satisfies the (8,128) block constraint)."""
    if requested >= hidden:
        return hidden
    t = (requested // 128) * 128
    while t >= 128:
        if hidden % t == 0:
            return t
        t -= 128
    return hidden


def ffn_pallas(x, w1, b1, w2, b2, *, tm=256, th=512):
    """x: (..., dim); w1: (hidden, dim); b1: (hidden,); w2: (dim, hidden); b2: (dim,).

    Weights/biases are taken in native torch nn.Linear layout; no transpose
    is performed in the wrapper.
    """
    orig_shape = x.shape
    dim = orig_shape[-1]
    hidden = w1.shape[0]

    x2d = x.reshape(-1, dim)
    M = x2d.shape[0]

    # Row tile: multiple of 8 sublanes, no bigger than needed for small M.
    m_aligned = ((M + 7) // 8) * 8
    tm = min(tm, m_aligned)
    tm = ((tm + 7) // 8) * 8

    # Pad rows only up to tm-1 extra rows.
    pad = (-M) % tm
    if pad:
        x2d = jnp.pad(x2d, ((0, pad), (0, 0)))
    Mp = x2d.shape[0]

    th = _pick_hidden_tile(hidden, th)

    b1_r = b1.reshape(1, hidden)
    b2_r = b2.reshape(1, dim)

    grid = (Mp // tm, hidden // th)

    bytes_accessed = int(
        x2d.size * x2d.dtype.itemsize
        + w1.size * w1.dtype.itemsize
        + w2.size * w2.dtype.itemsize
        + b1.size * b1.dtype.itemsize
        + b2.size * b2.dtype.itemsize
        + Mp * dim * x.dtype.itemsize
    )
    cost = pl.CostEstimate(
        flops=4 * Mp * dim * hidden,        # two matmuls: 2*M*K*N each
        transcendentals=Mp * hidden,        # erf
        bytes_accessed=bytes_accessed,
    )

    out = pl.pallas_call(
        _ffn_kernel,
        out_shape=jax.ShapeDtypeStruct((Mp, dim), x.dtype),
        grid_spec=pltpu.PrefetchScalarGridSpec(
            num_scalar_prefetch=0,
            grid=grid,
            in_specs=[
                pl.BlockSpec((tm, dim), lambda i, h: (i, 0)),     # x row tile
                pl.BlockSpec((th, dim), lambda i, h: (h, 0)),     # fc1 weight slice
                pl.BlockSpec((1, th), lambda i, h: (0, h)),       # fc1 bias slice
                pl.BlockSpec((dim, th), lambda i, h: (0, h)),     # fc2 weight slice
                pl.BlockSpec((1, dim), lambda i, h: (0, 0)),      # fc2 bias
            ],
            out_specs=pl.BlockSpec((tm, dim), lambda i, h: (i, 0)),
            scratch_shapes=[pltpu.VMEM((tm, dim), jnp.float32)],
        ),
        compiler_params=pltpu.CompilerParams(
            dimension_semantics=("parallel", "arbitrary"),
            vmem_limit_bytes=64 * 1024 * 1024,
        ),
        cost_estimate=cost,
    )(x2d, w1, b1_r, w2, b2_r)

    if pad:
        out = out[:M]
    return out.reshape(orig_shape)


def ffn_ref(x, w1, b1, w2, b2):
    h = jnp.einsum("...d,hd->...h", x, w1) + b1
    h = jax.nn.gelu(h, approximate=False)
    return jnp.einsum("...h,dh->...d", h, w2) + b2


if __name__ == "__main__":
    key = jax.random.PRNGKey(0)
    k_x, k_w1, k_b1, k_w2, k_b2 = jax.random.split(key, 5)

    batch, seq, dim, hidden = 2, 8, 64, 256

    x = jax.random.normal(k_x, (batch, seq, dim), dtype=jnp.float32)
    # nn.Linear shapes: weight (out, in), bias (out,)
    w1 = jax.random.normal(k_w1, (hidden, dim), dtype=jnp.float32) * 0.05
    b1 = jax.random.normal(k_b1, (hidden,), dtype=jnp.float32) * 0.05
    w2 = jax.random.normal(k_w2, (dim, hidden), dtype=jnp.float32) * 0.05
    b2 = jax.random.normal(k_b2, (dim,), dtype=jnp.float32) * 0.05

    # th=128 here so the small test exercises the hidden-tiled accumulation path.
    out = ffn_pallas(x, w1, b1, w2, b2, th=128)
    out = jax.block_until_ready(out)

    ref = ffn_ref(x, w1, b1, w2, b2)
    assert out.shape == ref.shape
    err = float(jnp.max(jnp.abs(out - ref)))
    assert jnp.allclose(out, ref, atol=5e-5, rtol=5e-5), err
    print("KERNEL_OK")
</pallas_src>

<mosaic_0001>
module attributes {stable_mosaic.version = 11 : i64} {
  func.func @_ffn_kernel(%arg0: i32, %arg1: i32, %arg2: memref<16x64xf32, #tpu.memory_space<vmem>>, %arg3: memref<128x64xf32, #tpu.memory_space<vmem>>, %arg4: memref<1x128xf32, #tpu.memory_space<vmem>>, %arg5: memref<64x128xf32, #tpu.memory_space<vmem>>, %arg6: memref<1x64xf32, #tpu.memory_space<vmem>>, %arg7: memref<16x64xf32, #tpu.memory_space<vmem>>, %arg8: memref<16x64xf32, #tpu.memory_space<vmem>>) attributes {dimension_semantics = [#tpu.dimension_semantics<parallel>, #tpu.dimension_semantics<arbitrary>], iteration_bounds = array<i64: 1, 2>, scalar_prefetch = 0 : i64, scratch_operands = 1 : i64, tpu.core_type = #tpu.core_type<tc>, window_params = [{transform_indices = @transform_0, window_bounds = array<i64: 16, 64>}, {transform_indices = @transform_1, window_bounds = array<i64: 128, 64>}, {transform_indices = @transform_2, window_bounds = array<i64: 1, 128>}, {transform_indices = @transform_3, window_bounds = array<i64: 64, 128>}, {pipeline_mode = #tpu.pipeline_mode<synchronous>, transform_indices = @transform_4, window_bounds = array<i64: 1, 64>}, {transform_indices = @transform_5, window_bounds = array<i64: 16, 64>}]} {
    %c0_i32 = arith.constant 0 : i32
    %0 = arith.cmpi eq, %arg1, %c0_i32 : i32
    %1 = arith.extui %0 : i1 to i32
    %c0_i32_0 = arith.constant 0 : i32
    %2 = arith.cmpi ne, %1, %c0_i32_0 : i32
    scf.if %2 {
      %cst_17 = arith.constant 0.000000e+00 : f32
      %25 = vector.broadcast %cst_17 : f32 to vector<16x64xf32>
      %c0_18 = arith.constant 0 : index
      %c0_19 = arith.constant 0 : index
      %26 = vector.load %arg8[%c0_18, %c0_19] : memref<16x64xf32, #tpu.memory_space<vmem>>, vector<16x64xf32>
      tpu.vector_store %arg8[%c0_18, %c0_19], %25 {strides = array<i32>} : memref<16x64xf32, #tpu.memory_space<vmem>>, vector<16x64xf32>,
    } else {
    }
    %c0 = arith.constant 0 : index
    %c0_1 = arith.constant 0 : index
    %3 = vector.load %arg2[%c0, %c0_1] : memref<16x64xf32, #tpu.memory_space<vmem>>, vector<16x64xf32>
    %c0_2 = arith.constant 0 : index
    %c0_3 = arith.constant 0 : index
    %4 = vector.load %arg3[%c0_2, %c0_3] : memref<128x64xf32, #tpu.memory_space<vmem>>, vector<128x64xf32>
    %cst = arith.constant dense<0.000000e+00> : vector<16x128xf32>
    %5 = tpu.matmul %3, %4, %cst {dimension_numbers = #tpu.dot_dimension_numbers<[1], [1], [0], [0], [0, 0, 1, 0], [], []>} : vector<16x64xf32>, vector<128x64xf32>, vector<16x128xf32> -> vector<16x128xf32>
    %c0_4 = arith.constant 0 : index
    %c0_5 = arith.constant 0 : index
    %6 = vector.load %arg4[%c0_4, %c0_5] : memref<1x128xf32, #tpu.memory_space<vmem>>, vector<1x128xf32>
    %7 = vector.broadcast %6 : vector<1x128xf32> to vector<16x128xf32>
    %8 = arith.addf %5, %7 : vector<16x128xf32>
    %cst_6 = arith.constant 5.000000e-01 : f32
    %9 = vector.broadcast %cst_6 : f32 to vector<16x128xf32>
    %10 = arith.mulf %9, %8 : vector<16x128xf32>
    %cst_7 = arith.constant 0.707106769 : f32
    %11 = vector.broadcast %cst_7 : f32 to vector<16x128xf32>
    %12 = arith.mulf %8, %11 : vector<16x128xf32>
    %13 = math.erf %12 : vector<16x128xf32>
    %cst_8 = arith.constant 1.000000e+00 : f32
    %14 = vector.broadcast %cst_8 : f32 to vector<16x128xf32>
    %15 = arith.addf %14, %13 : vector<16x128xf32>
    %16 = arith.mulf %10, %15 : vector<16x128xf32>
    %c0_9 = arith.constant 0 : index
    %c0_10 = arith.constant 0 : index
    %17 = vector.load %arg5[%c0_9, %c0_10] : memref<64x128xf32, #tpu.memory_space<vmem>>, vector<64x128xf32>
    %cst_11 = arith.constant dense<0.000000e+00> : vector<16x64xf32>
    %18 = tpu.matmul %16, %17, %cst_11 {dimension_numbers = #tpu.dot_dimension_numbers<[1], [1], [0], [0], [0, 0, 1, 0], [], []>} : vector<16x128xf32>, vector<64x128xf32>, vector<16x64xf32> -> vector<16x64xf32>
    %c0_12 = arith.constant 0 : index
    %c0_13 = arith.constant 0 : index
    %19 = vector.load %arg8[%c0_12, %c0_13] : memref<16x64xf32, #tpu.memory_space<vmem>>, vector<16x64xf32>
    %20 = arith.addf %19, %18 : vector<16x64xf32>
    %c0_14 = arith.constant 0 : index
    %c0_15 = arith.constant 0 : index
    %21 = vector.load %arg8[%c0_14, %c0_15] : memref<16x64xf32, #tpu.memory_space<vmem>>, vector<16x64xf32>
    tpu.vector_store %arg8[%c0_14, %c0_15], %20 {strides = array<i32>} : memref<16x64xf32, #tpu.memory_space<vmem>>, vector<16x64xf32>,
    %c1_i32 = arith.constant 1 : i32
    %22 = arith.cmpi eq, %arg1, %c1_i32 : i32
    %23 = arith.extui %22 : i1 to i32
    %c0_i32_16 = arith.constant 0 : i32
    %24 = arith.cmpi ne, %23, %c0_i32_16 : i32
    scf.if %24 {
      %c0_17 = arith.constant 0 : index
      %c0_18 = arith.constant 0 : index
      %25 = vector.load %arg8[%c0_17, %c0_18] : memref<16x64xf32, #tpu.memory_space<vmem>>, vector<16x64xf32>
      %c0_19 = arith.constant 0 : index
      %c0_20 = arith.constant 0 : index
      %26 = vector.load %arg6[%c0_19, %c0_20] : memref<1x64xf32, #tpu.memory_space<vmem>>, vector<1x64xf32>
      %27 = vector.broadcast %26 : vector<1x64xf32> to vector<16x64xf32>
      %28 = arith.addf %25, %27 : vector<16x64xf32>
      %c0_21 = arith.constant 0 : index
      %c0_22 = arith.constant 0 : index
      %29 = vector.load %arg7[%c0_21, %c0_22] : memref<16x64xf32, #tpu.memory_space<vmem>>, vector<16x64xf32>
      tpu.vector_store %arg7[%c0_21, %c0_22], %28 {strides = array<i32>} : memref<16x64xf32, #tpu.memory_space<vmem>>, vector<16x64xf32>,
    } else {
    }
    return
  }
  func.func @transform_0(%arg0: i32, %arg1: i32) -> (i32, i32) {
    %c0_i32 = arith.constant 0 : i32
    %c0_i32_0 = arith.constant 0 : i32
    return %arg0, %c0_i32 : i32, i32
  }
  func.func @transform_1(%arg0: i32, %arg1: i32) -> (i32, i32) {
    %c0_i32 = arith.constant 0 : i32
    %c0_i32_0 = arith.constant 0 : i32
    return %arg1, %c0_i32 : i32, i32
  }
  func.func @transform_2(%arg0: i32, %arg1: i32) -> (i32, i32) {
    %c0_i32 = arith.constant 0 : i32
    %c0_i32_0 = arith.constant 0 : i32
    return %c0_i32, %arg1 : i32, i32
  }
  func.func @transform_3(%arg0: i32, %arg1: i32) -> (i32, i32) {
    %c0_i32 = arith.constant 0 : i32
    %c0_i32_0 = arith.constant 0 : i32
    return %c0_i32, %arg1 : i32, i32
  }
  func.func @transform_4(%arg0: i32, %arg1: i32) -> (i32, i32) {
    %c0_i32 = arith.constant 0 : i32
    %c0_i32_0 = arith.constant 0 : i32
    %c0_i32_1 = arith.constant 0 : i32
    return %c0_i32, %c0_i32_0 : i32, i32
  }
  func.func @transform_5(%arg0: i32, %arg1: i32) -> (i32, i32) {
    %c0_i32 = arith.constant 0 : i32
    %c0_i32_0 = arith.constant 0 : i32
    return %arg0, %c0_i32 : i32, i32
  }
}

</mosaic_0001>

<llo_original>
// kernel: tpu_custom_call.1
$region0: #{tpu_custom_call.1}
  #allocation0 [shape = 'u32[]', space=smem, size = 0x4, offset = 0x4, fixed_abs, tag = 'smem constant byte address 0x4 - core index']
  #allocation1 [shape = 'u32[144,128]{1,0:T(1,128)}', space=vmem, size = 0x12000, scoped, tag = 'internal scratch']
  #allocation2 [shape = 'f32[16,64]{1,0:T(8,128)}', space=vmem, size = 0x2000, scoped, tag = 'scratch operand']
  %s0 = inlined_call_operand.hbm [shape: f32[16,64], index: 0, kind: input, shape index: {}]
  %s1 = inlined_call_operand.hbm [shape: f32[256,64], index: 1, kind: input, shape index: {}]
  %s2 = inlined_call_operand.hbm [shape: f32[1,256], index: 2, kind: input, shape index: {}]
  %s3 = inlined_call_operand.hbm [shape: f32[64,256], index: 3, kind: input, shape index: {}]
  %s4 = inlined_call_operand.hbm [shape: f32[1,64], index: 4, kind: input, shape index: {}]
  %s5 = inlined_call_operand.hbm [shape: f32[16,64], index: 5, kind: output, shape index: {}]
  %s6 = sld [smem:[#allocation0]]
  $region81: #{tpu_custom_call.1} parent=0
    _
  %s8 = ssub.s32 1, %s6
  %s9 = scalar_select 0, %s8, %s6
  $region1: #{tpu_custom_call.1} parent=0
    #allocation3 [shape = 'u8[8192]{0}', space=vmem, size = 0x2000, scoped, tag = 'input window, operand 0, single buffered']
    #allocation4 [shape = 's32[2]{0}', space=sflag, size = 0x8, scoped, tag = 'scoped memory for tpu_custom_call.1']
    #allocation5 [shape = 's32[2]{0}', space=sflag, size = 0x8, scoped, tag = 'scoped memory for tpu_custom_call.1']
    #allocation6 [shape = 'u8[131072]{0}', space=vmem, size = 0x20000, scoped, tag = 'input window, operand 1']
    #allocation7 [shape = 's32[2]{0}', space=sflag, size = 0x8, scoped, tag = 'scoped memory for tpu_custom_call.1']
    #allocation8 [shape = 'u8[1024]{0}', space=vmem, size = 0x400, scoped, tag = 'input window, operand 2']
    #allocation9 [shape = 'u8[65536]{0}', space=vmem, size = 0x10000, scoped, tag = 'input window, operand 3']
    #allocation10 [shape = 's32[2]{0}', space=sflag, size = 0x8, scoped, tag = 'scoped memory for tpu_custom_call.1']
    #allocation11 [shape = 'u8[512]{0}', space=vmem, size = 0x400, scoped, tag = 'input window, operand 4, single buffered']
    #allocation12 [shape = 'u8[8192]{0}', space=vmem, size = 0x2000, scoped, tag = 'output window, operand 0, single buffered']
    %10 = vsyncpa [#allocation4], 0
    %11 = vsyncpa [#allocation7], 0
    %s12 = scalar_lea.sflag [#allocation7], 1
    %13 = vsyncpa %s12, 0
    %14 = vsyncpa [#allocation10], 0
    %s15 = scalar_lea.sflag [#allocation10], 1
    %16 = vsyncpa %s15, 0
    %17 = vsyncpa [#allocation5], 0
    loop: start=0, step=1, limit=4
    $region2: #{tpu_custom_call.1} parent=1 // loop_pre_header
      _
    $region3: #{tpu_custom_call.1} parent=1 // loop_header
      %s19 = sphi 0, %s23
      %p20 = scmp.ge.s32.totalorder %s19, 4
      %s26 = sphi 0, %s38
      %s27 = sphi 0, %s34
      %s28 = sphi 0, %s26
      %s29 = sphi 0, %s27
      %s30 = sphi 0, %s28
      %s31 = sphi 0, %s29
      %s41 = sphi 0, %s43
      %s44 = sphi 0, %s41
      %s45 = sphi 0, %s44
      %s61 = sphi 0, %s45
      %s67 = sphi 0, %s69
      %s70 = sphi 0, %s67
      %s71 = sphi 0, %s70
      %s87 = sphi 0, %s71
      %s93 = sphi 0, %s95
      %s96 = sphi 0, %s93
      %s97 = sphi 0, %s96
      %s113 = sphi 0, %s97
      %s119 = sphi 0, %s121
      %s122 = sphi 0, %s119
      %s123 = sphi 0, %s122
      %s139 = sphi 0, %s123
      %s143 = sphi 0, %s143
      %s145 = sphi 0, %s143
      %s146 = sphi 0, %s145
      %s160 = sphi 0, %s146
      %s166 = sphi 0, %s168
      %s169 = sphi 0, %s166
      %s170 = sphi 0, %s169
      %s186 = sphi 0, %s170
    $region4: #{tpu_custom_call.1} parent=1 // loop_header_branch
      %22 = sbr.rel (%p20) target = $region8
    $region5: #{tpu_custom_call.1} parent=1 // loop_body
      %s24 = ssub.s32 %s19, 1
      %s25 = ssub.s32 %s19, 2
      %s32 = sadd.s32 1, %s27
      %p33 = scmp.ge.s32.totalorder %s32, 2
      %s34 = scalar_select %p33, 0, %s32
      %s35 = sadd.s32 1, %s26
      %s36 = scalar_select %p33, %s35, %s26
      %p37 = scmp.ge.s32.totalorder %s36, 1
      %s38 = scalar_select %p37, 0, %s36
      %s39 = ssub.s32 %s26, %s38
      %p40 = scmp.eq.s32.totalorder %s39, 0
      %s42 = sadd.s32 %s41, 1
      %s43 = scalar_select %p40, %s41, %s42
      %p46 = pneg %p40
      %p47 = scmp.eq.s32.totalorder %s19, 1
      %p48 = por %p46, %p47
      %p49 = scmp.ne.s32.totalorder %s41, %s44
      %p50 = scmp.eq.s32.totalorder %s19, 0
      %p51 = por %p49, %p50
      %p52 = scmp.ne.s32.totalorder %s41, %s44
      %p53 = scmp.eq.s32.totalorder %s24, 1
      %p54 = por %p52, %p53
      %p55 = scmp.ne.s32.totalorder %s44, %s45
      %p56 = scmp.eq.s32.totalorder %s24, 0
      %p57 = por %p55, %p56
      %p58 = scmp.ne.s32.totalorder %s44, %s45
      %p59 = scmp.eq.s32.totalorder %s25, 1
      %p60 = por %p58, %p59
      %p62 = scmp.ne.s32.totalorder %s45, %s61
      %p63 = scmp.eq.s32.totalorder %s25, 0
      %p64 = por %p62, %p63
      %s65 = ssub.s32 %s27, %s34
      %p66 = scmp.eq.s32.totalorder %s65, 0
      %s68 = sadd.s32 %s67, 1
      %s69 = scalar_select %p66, %s67, %s68
      %p72 = pneg %p66
      %p73 = scmp.eq.s32.totalorder %s19, 1
      %p74 = por %p72, %p73
      %p75 = scmp.ne.s32.totalorder %s67, %s70
      %p76 = scmp.eq.s32.totalorder %s19, 0
      %p77 = por %p75, %p76
      %p78 = scmp.ne.s32.totalorder %s67, %s70
      %p79 = scmp.eq.s32.totalorder %s24, 1
      %p80 = por %p78, %p79
      %p81 = scmp.ne.s32.totalorder %s70, %s71
      %p82 = scmp.eq.s32.totalorder %s24, 0
      %p83 = por %p81, %p82
      %p84 = scmp.ne.s32.totalorder %s70, %s71
      %p85 = scmp.eq.s32.totalorder %s25, 1
      %p86 = por %p84, %p85
      %p88 = scmp.ne.s32.totalorder %s71, %s87
      %p89 = scmp.eq.s32.totalorder %s25, 0
      %p90 = por %p88, %p89
      %s91 = ssub.s32 %s27, %s34
      %p92 = scmp.eq.s32.totalorder %s91, 0
      %s94 = sadd.s32 %s93, 1
      %s95 = scalar_select %p92, %s93, %s94
      %p98 = pneg %p92
      %p99 = scmp.eq.s32.totalorder %s19, 1
      %p100 = por %p98, %p99
      %p101 = scmp.ne.s32.totalorder %s93, %s96
      %p102 = scmp.eq.s32.totalorder %s19, 0
      %p103 = por %p101, %p102
      %p104 = scmp.ne.s32.totalorder %s93, %s96
      %p105 = scmp.eq.s32.totalorder %s24, 1
      %p106 = por %p104, %p105
      %p107 = scmp.ne.s32.totalorder %s96, %s97
      %p108 = scmp.eq.s32.totalorder %s24, 0
      %p109 = por %p107, %p108
      %p110 = scmp.ne.s32.totalorder %s96, %s97
      %p111 = scmp.eq.s32.totalorder %s25, 1
      %p112 = por %p110, %p111
      %p114 = scmp.ne.s32.totalorder %s97, %s113
      %p115 = scmp.eq.s32.totalorder %s25, 0
      %p116 = por %p114, %p115
      %s117 = ssub.s32 %s27, %s34
      %p118 = scmp.eq.s32.totalorder %s117, 0
      %s120 = sadd.s32 %s119, 1
      %s121 = scalar_select %p118, %s119, %s120
      %p124 = pneg %p118
      %p125 = scmp.eq.s32.totalorder %s19, 1
      %p126 = por %p124, %p125
      %p127 = scmp.ne.s32.totalorder %s119, %s122
      %p128 = scmp.eq.s32.totalorder %s19, 0
      %p129 = por %p127, %p128
      %p130 = scmp.ne.s32.totalorder %s119, %s122
      %p131 = scmp.eq.s32.totalorder %s24, 1
      %p132 = por %p130, %p131
      %p133 = scmp.ne.s32.totalorder %s122, %s123
      %p134 = scmp.eq.s32.totalorder %s24, 0
      %p135 = por %p133, %p134
      %p136 = scmp.ne.s32.totalorder %s122, %s123
      %p137 = scmp.eq.s32.totalorder %s25, 1
      %p138 = por %p136, %p137
      %p140 = scmp.ne.s32.totalorder %s123, %s139
      %p141 = scmp.eq.s32.totalorder %s25, 0
      %p142 = por %p140, %p141
      %s144 = sadd.s32 %s143, 1
      %p147 = scmp.eq.s32.totalorder %s19, 1
      %p148 = scmp.ne.s32.totalorder %s143, %s145
      %p149 = scmp.eq.s32.totalorder %s19, 0
      %p150 = por %p148, %p149
      %p151 = scmp.ne.s32.totalorder %s143, %s145
      %p152 = scmp.eq.s32.totalorder %s24, 1
      %p153 = por %p151, %p152
      %p154 = scmp.ne.s32.totalorder %s145, %s146
      %p155 = scmp.eq.s32.totalorder %s24, 0
      %p156 = por %p154, %p155
      %p157 = scmp.ne.s32.totalorder %s145, %s146
      %p158 = scmp.eq.s32.totalorder %s25, 1
      %p159 = por %p157, %p158
      %p161 = scmp.ne.s32.totalorder %s146, %s160
      %p162 = scmp.eq.s32.totalorder %s25, 0
      %p163 = por %p161, %p162
      %s164 = ssub.s32 %s26, %s38
      %p165 = scmp.eq.s32.totalorder %s164, 0
      %s167 = sadd.s32 %s166, 1
      %s168 = scalar_select %p165, %s166, %s167
      %p171 = pneg %p165
      %p172 = scmp.eq.s32.totalorder %s19, 1
      %p173 = por %p171, %p172
      %p174 = scmp.ne.s32.totalorder %s166, %s169
      %p175 = scmp.eq.s32.totalorder %s19, 0
      %p176 = por %p174, %p175
      %p177 = scmp.ne.s32.totalorder %s166, %s169
      %p178 = scmp.eq.s32.totalorder %s24, 1
      %p179 = por %p177, %p178
      %p180 = scmp.ne.s32.totalorder %s169, %s170
      %p181 = scmp.eq.s32.totalorder %s24, 0
      %p182 = por %p180, %p181
      %p183 = scmp.ne.s32.totalorder %s169, %s170
      %p184 = scmp.eq.s32.totalorder %s25, 1
      %p185 = por %p183, %p184
      %p187 = scmp.ne.s32.totalorder %s170, %s186
      %p188 = scmp.eq.s32.totalorder %s25, 0
      %p189 = por %p187, %p188
      %p190 = scmp.le.s32.totalorder 1, %s19
      %p191 = scmp.lt.s32.totalorder %s19, 3
      %p192 = pnand %p190, %p191
      %p193 = pneg %p192
      // Predicated region
      $region9: #{tpu_custom_call.1} parent=5 // pred_check
        _
      $region10: #{tpu_custom_call.1} parent=5 // pred_check_branch
        %195 = sbr.rel (%p192) target = $region12
      $region11: #{tpu_custom_call.1} parent=5 // pred_region
        %s196 = ssub.s32 %s19, 1
        // Predicated region
        $region13: #{tpu_custom_call.1} parent=11 // pred_check
          %p197 = pneg %p57
        $region14: #{tpu_custom_call.1} parent=11 // pred_check_branch
          %199 = sbr.rel (%p197) target = $region16
        $region15: #{tpu_custom_call.1} parent=11 // pred_region
          %s200 = smul.u32 2, %s28
          %s202 = ssub.s32 256, 256
          %203 = vsyncadd [#allocation4], %s202
          %s204 = smul.addr %s200, 128
          %s205 = scalar_lea.hbm %s0, %s204
          %s206 = sshll.u32 [#allocation3], 4
          %s207 = int_to_ptr.vmem [resolvable:$true] %s206
          %212 = dma.hbm_to_vmem [thread:$0]  %s205, 256, %s207, [#allocation4], 128, 128, 8
        $region16: #{tpu_custom_call.1} parent=11 // pred_fallthru
          _
        // Predicated region
        $region17: #{tpu_custom_call.1} parent=11 // pred_check
          %p213 = pneg %p156
        $region18: #{tpu_custom_call.1} parent=11 // pred_check_branch
          %215 = sbr.rel (%p213) target = $region20
        $region19: #{tpu_custom_call.1} parent=11 // pred_region
          %s217 = ssub.s32 16, 16
          %218 = vsyncadd [#allocation10], %s217
          %s220 = sshll.u32 [#allocation11], 4
          %s221 = int_to_ptr.vmem [resolvable:$true] %s220
          %223 = dma.hbm_to_vmem [thread:$0]  %s4, 16, %s221, [#allocation10]
        $region20: #{tpu_custom_call.1} parent=11 // pred_fallthru
          _
      $region12: #{tpu_custom_call.1} parent=5 // pred_fallthru
        _
      %p224 = scmp.lt.s32.totalorder %s19, 2
      // Predicated region
      $region21: #{tpu_custom_call.1} parent=5 // pred_check
        %p225 = pneg %p224
      $region22: #{tpu_custom_call.1} parent=5 // pred_check_branch
        %227 = sbr.rel (%p225) target = $region24
      $region23: #{tpu_custom_call.1} parent=5 // pred_region
        // Predicated region
        $region25: #{tpu_custom_call.1} parent=23 // pred_check
          %p228 = pneg %p77
        $region26: #{tpu_custom_call.1} parent=23 // pred_check_branch
          %230 = sbr.rel (%p228) target = $region28
        $region27: #{tpu_custom_call.1} parent=23 // pred_region
          %s231 = sand.u32 %s19, 1
          %s232 = scalar_lea.sflag [#allocation7], %s231
          %s233 = sand.u32 %s67, 1
          %s234 = smul.addr %s233, 128
          %s235 = scalar_lea.vmem [#allocation6], %s234
          %s236 = smul.u32 16, %s27
          %s238 = ssub.s32 2048, 2048
          %239 = vsyncadd %s232, %s238
          %s240 = smul.addr %s236, 128
          %s241 = scalar_lea.hbm %s1, %s240
          %s242 = sshll.u32 %s235, 4
          %s243 = int_to_ptr.vmem [resolvable:$true] %s242
          %248 = dma.hbm_to_vmem [thread:$0]  %s241, 2048, %s243, %s232, 128, 128, 8
        $region28: #{tpu_custom_call.1} parent=23 // pred_fallthru
          _
        // Predicated region
        $region29: #{tpu_custom_call.1} parent=23 // pred_check
          %p249 = pneg %p103
        $region30: #{tpu_custom_call.1} parent=23 // pred_check_branch
          %251 = sbr.rel (%p249) target = $region32
        $region31: #{tpu_custom_call.1} parent=23 // pred_region
          %s252 = sand.u32 %s19, 1
          %s253 = scalar_lea.sflag [#allocation7], %s252
          %s254 = sand.u32 %s93, 1
          %s255 = scalar_lea.vmem [#allocation8], %s254
          %s257 = ssub.s32 16, 16
          %258 = vsyncadd %s253, %s257
          %s259 = smul.addr %s27, 16
          %s260 = scalar_lea.hbm %s2, %s259
          %s262 = sshll.u32 %s255, 4
          %s263 = int_to_ptr.vmem [resolvable:$true] %s262
          %265 = dma.hbm_to_vmem [thread:$0]  %s260, 16, %s263, %s253
        $region32: #{tpu_custom_call.1} parent=23 // pred_fallthru
          _
        // Predicated region
        $region33: #{tpu_custom_call.1} parent=23 // pred_check
          %p266 = pneg %p129
        $region34: #{tpu_custom_call.1} parent=23 // pred_check_branch
          %268 = sbr.rel (%p266) target = $region36
        $region35: #{tpu_custom_call.1} parent=23 // pred_region
          %s269 = sand.u32 %s19, 1
          %s270 = scalar_lea.sflag [#allocation10], %s269
          %s271 = sand.u32 %s119, 1
          %s272 = smul.addr %s271, 64
          %s273 = scalar_lea.vmem [#allocation9], %s272
          %s275 = ssub.s32 1024, 1024
          %276 = vsyncadd %s270, %s275
          %s277 = smul.addr %s27, 128
          %s278 = scalar_lea.hbm %s3, %s277
          %s279 = sshll.u32 %s273, 4
          %s280 = int_to_ptr.vmem [resolvable:$true] %s279
          %285 = dma.hbm_to_vmem [thread:$0]  %s278, 1024, %s280, %s270, 256, 128, 8
        $region36: #{tpu_custom_call.1} parent=23 // pred_fallthru
          _
      $region24: #{tpu_custom_call.1} parent=5 // pred_fallthru
        _
      %p286 = scmp.le.s32.totalorder 1, %s19
      %p287 = scmp.lt.s32.totalorder %s19, 3
      %p288 = pnand %p286, %p287
      %p289 = pneg %p288
      // Predicated region
      $region37: #{tpu_custom_call.1} parent=5 // pred_check
        _
      $region38: #{tpu_custom_call.1} parent=5 // pred_check_branch
        %291 = sbr.rel (%p288) target = $region40
      $region39: #{tpu_custom_call.1} parent=5 // pred_region
        %s292 = ssub.s32 %s19, 1
        // Predicated region
        $region41: #{tpu_custom_call.1} parent=39 // pred_check
          %p293 = pneg %p57
        $region42: #{tpu_custom_call.1} parent=39 // pred_check_branch
          %295 = sbr.rel (%p293) target = $region44
        $region43: #{tpu_custom_call.1} parent=39 // pred_region
          %296 = dma.done [#allocation4], 256
        $region44: #{tpu_custom_call.1} parent=39 // pred_fallthru
          _
        %s297 = sand.u32 %s24, 1
        %s298 = scalar_lea.sflag [#allocation7], %s297
        %s299 = sand.u32 %s70, 1
        %s300 = smul.addr %s299, 128
        %s301 = scalar_lea.vmem [#allocation6], %s300
        // Predicated region
        $region45: #{tpu_custom_call.1} parent=39 // pred_check
          %p302 = pneg %p83
        $region46: #{tpu_custom_call.1} parent=39 // pred_check_branch
          %304 = sbr.rel (%p302) target = $region48
        $region47: #{tpu_custom_call.1} parent=39 // pred_region
          %305 = dma.done %s298, 2048
        $region48: #{tpu_custom_call.1} parent=39 // pred_fallthru
          _
        %s306 = sand.u32 %s24, 1
        %s307 = scalar_lea.sflag [#allocation7], %s306
        %s308 = sand.u32 %s96, 1
        %s309 = scalar_lea.vmem [#allocation8], %s308
        // Predicated region
        $region49: #{tpu_custom_call.1} parent=39 // pred_check
          %p310 = pneg %p109
        $region50: #{tpu_custom_call.1} parent=39 // pred_check_branch
          %312 = sbr.rel (%p310) target = $region52
        $region51: #{tpu_custom_call.1} parent=39 // pred_region
          %313 = dma.done %s307, 16
        $region52: #{tpu_custom_call.1} parent=39 // pred_fallthru
          _
        %s314 = sand.u32 %s24, 1
        %s315 = scalar_lea.sflag [#allocation10], %s314
        %s316 = sand.u32 %s122, 1
        %s317 = smul.addr %s316, 64
        %s318 = scalar_lea.vmem [#allocation9], %s317
        // Predicated region
        $region53: #{tpu_custom_call.1} parent=39 // pred_check
          %p319 = pneg %p135
        $region54: #{tpu_custom_call.1} parent=39 // pred_check_branch
          %321 = sbr.rel (%p319) target = $region56
        $region55: #{tpu_custom_call.1} parent=39 // pred_region
          %322 = dma.done %s315, 1024
        $region56: #{tpu_custom_call.1} parent=39 // pred_fallthru
          _
        // Predicated region
        $region57: #{tpu_custom_call.1} parent=39 // pred_check
          %p323 = pneg %p156
        $region58: #{tpu_custom_call.1} parent=39 // pred_check_branch
          %325 = sbr.rel (%p323) target = $region60
        $region59: #{tpu_custom_call.1} parent=39 // pred_region
          %326 = dma.done [#allocation10], 16
        $region60: #{tpu_custom_call.1} parent=39 // pred_fallthru
          _
        %p327 = pneg %p57
        %p328 = pneg %p54
        %s329 = sand.u32 %s24, 1
        %s330 = scalar_lea.sflag [#allocation7], %s329
        %s331 = sand.u32 %s70, 1
        %s332 = smul.addr %s331, 128
        %s333 = scalar_lea.vmem [#allocation6], %s332
        %p334 = pneg %p83
        %p335 = pneg %p80
        %s336 = sand.u32 %s24, 1
        %s337 = scalar_lea.sflag [#allocation7], %s336
        %s338 = sand.u32 %s96, 1
        %s339 = scalar_lea.vmem [#allocation8], %s338
        %p340 = pneg %p109
        %p341 = pneg %p106
        %s342 = sand.u32 %s24, 1
        %s343 = scalar_lea.sflag [#allocation10], %s342
        %s344 = sand.u32 %s122, 1
        %s345 = smul.addr %s344, 64
        %s346 = scalar_lea.vmem [#allocation9], %s345
        %p347 = pneg %p135
        %p348 = pneg %p132
        %p349 = pneg %p156
        %p350 = pneg %p153
        %p351 = pneg %p182
        %p352 = pneg %p179
        %s353 = smul.u32 2, %s28
        %s354 = smul.u32 16, %s29
        %s355 = smul.u32 2, %s28
        %p356 = scmp.eq.s32.totalorder %s29, 0
        // Predicated region
        $region61: #{tpu_custom_call.1} parent=39 // pred_check
          %p357 = pneg %p356
        $region62: #{tpu_custom_call.1} parent=39 // pred_check_branch
          %359 = sbr.rel (%p357) target = $region64
        $region63: #{tpu_custom_call.1} parent=39 // pred_region
          %vm360 = vcmask 523264
          %361 = vst.msk [vmem:[#allocation2] sm:$0xff] %vm360, 0.0
          %362 = vst.msk [vmem:[#allocation2 + $0x8] sm:$0xff] %vm360, 0.0
        $region64: #{tpu_custom_call.1} parent=39 // pred_fallthru
          _
        %v363 = vld [vmem:[#allocation3] sm:$0xff]
        %v364 = vld [vmem:[#allocation3 + $0x8] sm:$0xff]
        %v365 = vld [vmem:[%s301] sm:$0xff]
        %v366 = vld [vmem:[%s301 + $0x8] sm:$0xff]
        %v367 = vld [vmem:[%s301 + $0x10] sm:$0xff]
        %v368 = vld [vmem:[%s301 + $0x18] sm:$0xff]
        %v369 = vld [vmem:[%s301 + $0x20] sm:$0xff]
        %v370 = vld [vmem:[%s301 + $0x28] sm:$0xff]
        %v371 = vld [vmem:[%s301 + $0x30] sm:$0xff]
        %v372 = vld [vmem:[%s301 + $0x38] sm:$0xff]
        %v373 = vld [vmem:[%s301 + $0x40] sm:$0xff]
        %v374 = vld [vmem:[%s301 + $0x48] sm:$0xff]
        %v375 = vld [vmem:[%s301 + $0x50] sm:$0xff]
        %v376 = vld [vmem:[%s301 + $0x58] sm:$0xff]
        %v377 = vld [vmem:[%s301 + $0x60] sm:$0xff]
        %v378 = vld [vmem:[%s301 + $0x68] sm:$0xff]
        %v379 = vld [vmem:[%s301 + $0x70] sm:$0xff]
        %v380 = vld [vmem:[%s301 + $0x78] sm:$0xff]
        %v381 = vld [vmem:[%s309] sm:$0x1]
        %v383 = vlaneseq
        %v384 = vshrl.u32 %v383, 7
        %v385 = vsub.s32 0, %v384
        %v386 = vrot.slane %v381, %v385
        %vm388 = vcmask 523264
        %v390 = vsel %vm388, %v363, 0
        %v393 = vsel %vm388, %v364, 0
        %v396 = vsel %vm388, %v365, 0
        %v399 = vsel %vm388, %v366, 0
        %v402 = vsel %vm388, %v367, 0
        %v405 = vsel %vm388, %v368, 0
        %v408 = vsel %vm388, %v369, 0
        %v411 = vsel %vm388, %v370, 0
        %v414 = vsel %vm388, %v371, 0
        %v417 = vsel %vm388, %v372, 0
        %v420 = vsel %vm388, %v373, 0
        %v423 = vsel %vm388, %v374, 0
        %v426 = vsel %vm388, %v375, 0
        %v429 = vsel %vm388, %v376, 0
        %v432 = vsel %vm388, %v377, 0
        %v435 = vsel %vm388, %v378, 0
        %v438 = vsel %vm388, %v379, 0
        %v441 = vsel %vm388, %v380, 0
        %443 = vmatprep.subr.mxu0 0.0
        %444 = vmatpush1.xpose.msra.mxu0 %v396
        %445 = vmatprep.subr.mxu0 0.0
        %446 = vmatpush1.xpose.msra.mxu0 %v399
        %447 = vmatprep.subr.mxu0 0.0
        %448 = vmatpush1.xpose.msra.mxu0 %v402
        %449 = vmatprep.subr.mxu0 0.0
        %450 = vmatpush1.xpose.msra.mxu0 %v405
        %451 = vmatprep.subr.mxu0 0.0
        %452 = vmatpush1.xpose.msra.mxu0 %v408
        %453 = vmatprep.subr.mxu0 0.0
        %454 = vmatpush1.xpose.msra.mxu0 %v411
        %455 = vmatprep.subr.mxu0 0.0
        %456 = vmatpush1.xpose.msra.mxu0 %v414
        %457 = vmatprep.subr.mxu0 0.0
        %458 = vmatpush1.xpose.msra.mxu0 %v417
        %459 = vmatprep.subr.mxu0 0.0
        %460 = vmatpush1.xpose.msra.mxu0 %v420
        %461 = vmatprep.subr.mxu0 0.0
        %462 = vmatpush1.xpose.msra.mxu0 %v423
        %463 = vmatprep.subr.mxu0 0.0
        %464 = vmatpush1.xpose.msra.mxu0 %v426
        %465 = vmatprep.subr.mxu0 0.0
        %466 = vmatpush1.xpose.msra.mxu0 %v429
        %467 = vmatprep.subr.mxu0 0.0
        %468 = vmatpush1.xpose.msra.mxu0 %v432
        %469 = vmatprep.subr.mxu0 0.0
        %470 = vmatpush1.xpose.msra.mxu0 %v435
        %471 = vmatprep.subr.mxu0 0.0
        %472 = vmatpush1.xpose.msra.mxu0 %v438
        %473 = vmatprep.subr.mxu0 0.0
        %474 = vmatpush1.xpose.msra.mxu0 %v441
        %475 = vmatprep.subr.mxu0 0.0
        %476 = vmatpush1.xpose.msra.mxu0 0.0
        %477 = vmatprep.subr.mxu0 0.0
        %478 = vmatpush1.xpose.msra.mxu0 0.0
        %479 = vmatprep.subr.mxu0 0.0
        %480 = vmatpush1.xpose.msra.mxu0 0.0
        %481 = vmatprep.subr.mxu0 0.0
        %482 = vmatpush1.xpose.msra.mxu0 0.0
        %483 = vmatprep.subr.mxu0 0.0
        %484 = vmatpush1.xpose.msra.mxu0 0.0
        %485 = vmatprep.subr.mxu0 0.0
        %486 = vmatpush1.xpose.msra.mxu0 0.0
        %487 = vmatprep.subr.mxu0 0.0
        %488 = vmatpush1.xpose.msra.mxu0 0.0
        %489 = vmatprep.subr.mxu0 0.0
        %490 = vmatpush1.xpose.msra.mxu0 0.0
        %491 = vmatprep.subr.mxu0 0.0
        %492 = vmatpush1.xpose.msra.mxu0 0.0
        %493 = vmatprep.subr.mxu0 0.0
        %494 = vmatpush1.xpose.msra.mxu0 0.0
        %495 = vmatprep.subr.mxu0 0.0
        %496 = vmatpush1.xpose.msra.mxu0 0.0
        %497 = vmatprep.subr.mxu0 0.0
        %498 = vmatpush1.xpose.msra.mxu0 0.0
        %499 = vmatprep.subr.mxu0 0.0
        %500 = vmatpush1.xpose.msra.mxu0 0.0
        %501 = vmatprep.subr.mxu0 0.0
        %502 = vmatpush1.xpose.msra.mxu0 0.0
        %503 = vmatprep.subr.mxu0 0.0
        %504 = vmatpush1.xpose.msra.mxu0 0.0
        %505 = vmatprep.subr.mxu0 0.0
        %506 = vmatpush1.xpose.msra.mxu0 0.0
        %507 = vmatprep.mubr.f32.mxu0 0.0
        %508 = vmatmul.mubr.f32.gmra.mrb[0].mxu0 %v390
        %v509 = vpop.f32.mrb[0].mxu0
        %v510 = vadd.f32 %v386, %v509
        %v511 = vpop.f32.mrb[0].mxu0
        %512 = vmatprep.mubr.f32.mxu0 0.0
        %513 = vmatmul.mubr.f32.gmra.mrb[0].mxu0 %v393
        %v514 = vpop.f32.mrb[0].mxu0
        %v515 = vadd.f32 %v386, %v514
        %v516 = vpop.f32.mrb[0].mxu0
        %517 = vdwg.mxu0
        %v518 = vmul.f32 %v510, 0.5
        %v519 = vmul.f32 %v515, 0.5
        %v520 = vmul.f32 %v510, 0.70710677
        %v521 = vmul.f32 %v515, 0.70710677
        %v522 = verf.f32.pop %v520
        %v523 = verf.f32.pop %v521
        %v524 = vadd.f32 %v522, 1.0
        %v525 = vadd.f32 %v523, 1.0
        %v526 = vmul.f32 %v518, %v524
        %v527 = vmul.f32 %v519, %v525
        %v528 = vld [vmem:[%s318] sm:$0xff]
        %v529 = vld [vmem:[%s318 + $0x8] sm:$0xff]
        %v530 = vld [vmem:[%s318 + $0x10] sm:$0xff]
        %v531 = vld [vmem:[%s318 + $0x18] sm:$0xff]
        %v532 = vld [vmem:[%s318 + $0x20] sm:$0xff]
        %v533 = vld [vmem:[%s318 + $0x28] sm:$0xff]
        %v534 = vld [vmem:[%s318 + $0x30] sm:$0xff]
        %v535 = vld [vmem:[%s318 + $0x38] sm:$0xff]
        %536 = vmatprep.subr.mxu0 0.0
        %537 = vmatpush1.xpose.msra.mxu0 %v528
        %538 = vmatprep.subr.mxu0 0.0
        %539 = vmatpush1.xpose.msra.mxu0 %v529
        %540 = vmatprep.subr.mxu0 0.0
        %541 = vmatpush1.xpose.msra.mxu0 %v530
        %542 = vmatprep.subr.mxu0 0.0
        %543 = vmatpush1.xpose.msra.mxu0 %v531
        %544 = vmatprep.subr.mxu0 0.0
        %545 = vmatpush1.xpose.msra.mxu0 %v532
        %546 = vmatprep.subr.mxu0 0.0
        %547 = vmatpush1.xpose.msra.mxu0 %v533
        %548 = vmatprep.subr.mxu0 0.0
        %549 = vmatpush1.xpose.msra.mxu0 %v534
        %550 = vmatprep.subr.mxu0 0.0
        %551 = vmatpush1.xpose.msra.mxu0 %v535
        %552 = vmatprep.subr.mxu0 0.0
        %553 = vmatpush1.xpose.msra.mxu0 0.0
        %554 = vmatprep.subr.mxu0 0.0
        %555 = vmatpush1.xpose.msra.mxu0 0.0
        %556 = vmatprep.subr.mxu0 0.0
        %557 = vmatpush1.xpose.msra.mxu0 0.0
        %558 = vmatprep.subr.mxu0 0.0
        %559 = vmatpush1.xpose.msra.mxu0 0.0
        %560 = vmatprep.subr.mxu0 0.0
        %561 = vmatpush1.xpose.msra.mxu0 0.0
        %562 = vmatprep.subr.mxu0 0.0
        %563 = vmatpush1.xpose.msra.mxu0 0.0
        %564 = vmatprep.subr.mxu0 0.0
        %565 = vmatpush1.xpose.msra.mxu0 0.0
        %566 = vmatprep.subr.mxu0 0.0
        %567 = vmatpush1.xpose.msra.mxu0 0.0
        %568 = vmatprep.subr.mxu0 0.0
        %569 = vmatpush1.xpose.msra.mxu0 0.0
        %570 = vmatprep.subr.mxu0 0.0
        %571 = vmatpush1.xpose.msra.mxu0 0.0
        %572 = vmatprep.subr.mxu0 0.0
        %573 = vmatpush1.xpose.msra.mxu0 0.0
        %574 = vmatprep.subr.mxu0 0.0
        %575 = vmatpush1.xpose.msra.mxu0 0.0
        %576 = vmatprep.subr.mxu0 0.0
        %577 = vmatpush1.xpose.msra.mxu0 0.0
        %578 = vmatprep.subr.mxu0 0.0
        %579 = vmatpush1.xpose.msra.mxu0 0.0
        %580 = vmatprep.subr.mxu0 0.0
        %581 = vmatpush1.xpose.msra.mxu0 0.0
        %582 = vmatprep.subr.mxu0 0.0
        %583 = vmatpush1.xpose.msra.mxu0 0.0
        %584 = vmatprep.subr.mxu0 0.0
        %585 = vmatpush1.xpose.msra.mxu0 0.0
        %586 = vmatprep.subr.mxu0 0.0
        %587 = vmatpush1.xpose.msra.mxu0 0.0
        %588 = vmatprep.subr.mxu0 0.0
        %589 = vmatpush1.xpose.msra.mxu0 0.0
        %590 = vmatprep.subr.mxu0 0.0
        %591 = vmatpush1.xpose.msra.mxu0 0.0
        %592 = vmatprep.subr.mxu0 0.0
        %593 = vmatpush1.xpose.msra.mxu0 0.0
        %594 = vmatprep.subr.mxu0 0.0
        %595 = vmatpush1.xpose.msra.mxu0 0.0
        %596 = vmatprep.subr.mxu0 0.0
        %597 = vmatpush1.xpose.msra.mxu0 0.0
        %598 = vmatprep.subr.mxu0 0.0
        %599 = vmatpush1.xpose.msra.mxu0 0.0
        %600 = vmatprep.mubr.f32.mxu0 0.0
        %601 = vmatmul.mubr.f32.gmra.mrb[0].mxu0 %v526
        %v602 = vpop.f32.mrb[0].mxu0
        %v603 = vadd.f32 0.0, %v602
        %v604 = vpop.f32.mrb[0].mxu0
        %605 = vmatprep.mubr.f32.mxu0 0.0
        %606 = vmatmul.mubr.f32.gmra.mrb[0].mxu0 %v527
        %v607 = vpop.f32.mrb[0].mxu0
        %v608 = vadd.f32 0.0, %v607
        %v609 = vpop.f32.mrb[0].mxu0
        %610 = vdwg.mxu0
        %v611 = vld [vmem:[#allocation2] sm:$0xff]
        %v612 = vld [vmem:[#allocation2 + $0x8] sm:$0xff]
        %v613 = vadd.f32 %v611, %v603
        %v614 = vadd.f32 %v612, %v608
        %615 = vst.msk [vmem:[#allocation2] sm:$0xff] %vm388, %v613
        %616 = vst.msk [vmem:[#allocation2 + $0x8] sm:$0xff] %vm388, %v614
        %p617 = scmp.eq.s32.totalorder %s29, 1
        // Predicated region
        $region65: #{tpu_custom_call.1} parent=39 // pred_check
          %p618 = pneg %p617
        $region66: #{tpu_custom_call.1} parent=39 // pred_check_branch
          %620 = sbr.rel (%p618) target = $region68
        $region67: #{tpu_custom_call.1} parent=39 // pred_region
          %v621 = vld [vmem:[#allocation2] sm:$0xff]
          %v622 = vld [vmem:[#allocation2 + $0x8] sm:$0xff]
          %v623 = vld [vmem:[#allocation11] sm:$0x1]
          %v625 = vlaneseq
          %v626 = vshrl.u32 %v625, 7
          %v627 = vsub.s32 0, %v626
          %v628 = vrot.slane %v623, %v627
          %v630 = vadd.f32 %v621, %v628
          %v631 = vadd.f32 %v622, %v628
          %632 = vst.msk [vmem:[#allocation12] sm:$0xff] %vm388, %v630
          %633 = vst.msk [vmem:[#allocation12 + $0x8] sm:$0xff] %vm388, %v631
        $region68: #{tpu_custom_call.1} parent=39 // pred_fallthru
          _
        // Predicated region
        $region69: #{tpu_custom_call.1} parent=39 // pred_check
          %p634 = pneg %p179
        $region70: #{tpu_custom_call.1} parent=39 // pred_check_branch
          %636 = sbr.rel (%p634) target = $region72
        $region71: #{tpu_custom_call.1} parent=39 // pred_region
          %s637 = smul.u32 2, %s28
          %s639 = ssub.s32 256, 256
          %640 = vsyncadd [#allocation5], %s639
          %s641 = smul.addr %s637, 128
          %s642 = scalar_lea.hbm %s5, %s641
          %s643 = sshll.u32 [#allocation12], 4
          %s644 = int_to_ptr.vmem [resolvable:$true] %s643
          %649 = dma.vmem_to_hbm [thread:$0]  %s644, 256, %s642, [#allocation5], 128, 128, 8
        $region72: #{tpu_custom_call.1} parent=39 // pred_fallthru
          _
        // Predicated region
        $region73: #{tpu_custom_call.1} parent=39 // pred_check
          %p650 = pneg %p179
        $region74: #{tpu_custom_call.1} parent=39 // pred_check_branch
          %652 = sbr.rel (%p650) target = $region76
        $region75: #{tpu_custom_call.1} parent=39 // pred_region
          %653 = dma.done [#allocation5], 256
        $region76: #{tpu_custom_call.1} parent=39 // pred_fallthru
          _
      $region40: #{tpu_custom_call.1} parent=5 // pred_fallthru
        _
      %p654 = scmp.le.s32.totalorder 2, %s19
      // Predicated region
      $region77: #{tpu_custom_call.1} parent=5 // pred_check
        %p655 = pneg %p654
      $region78: #{tpu_custom_call.1} parent=5 // pred_check_branch
        %657 = sbr.rel (%p655) target = $region80
      $region79: #{tpu_custom_call.1} parent=5 // pred_region
        %s658 = ssub.s32 %s19, 2
      $region80: #{tpu_custom_call.1} parent=5 // pred_fallthru
        _
    $region6: #{tpu_custom_call.1} parent=1 // loop_footer
      %s23 = sadd.s32 1, %s19
    $region7: #{tpu_custom_call.1} parent=1 // loop_footer_branch
      %18 = sbr.rel target = $region3
    $region8: #{tpu_custom_call.1} parent=1 // loop_exit
      _
    %659 = vsyncpa [#allocation4], 1
    %s660 = scalar_lea.sflag [#allocation4], 1
    %661 = vsyncpa %s660, 1
    %662 = vsyncpa [#allocation7], 1
    %s663 = scalar_lea.sflag [#allocation7], 1
    %664 = vsyncpa %s663, 1
    %665 = vsyncpa [#allocation10], 1
    %s666 = scalar_lea.sflag [#allocation10], 1
    %667 = vsyncpa %s666, 1
    %668 = vsyncpa [#allocation5], 1
    %s669 = scalar_lea.sflag [#allocation5], 1
    %670 = vsyncpa %s669, 1

</llo_original>
